<compile_context>
chip_gen: v6e
topology: v6e:2x2x1
jax: 0.10.0
libtpu: 0.0.40
codegen_flags: <defaults>
</compile_context>

<pallas_src>
import functools

import jax
import jax.numpy as jnp
import numpy as np
from jax.experimental import pallas as pl
from jax.experimental.pallas import tpu as pltpu


def _pointwise(w, x):
    """1x1 conv as (C_out, C_in) @ (C_in, HW).

    For shallow contractions (C_in <= 32) the MXU would be ~3% utilized, so do
    unrolled VPU multiply-accumulates instead; otherwise use the MXU with bf16
    operands and f32 accumulation.
    """
    ci = x.shape[0]
    if ci <= 32:
        acc0 = w[:, 0:1] * x[0:1, :]
        acc1 = None
        for c in range(1, ci):
            term = w[:, c:c + 1] * x[c:c + 1, :]
            if c % 2 == 1:
                acc1 = term if acc1 is None else acc1 + term
            else:
                acc0 = acc0 + term
        return acc0 if acc1 is None else acc0 + acc1
    # Production channel counts: pad C_in/C_out to multiples of 128/8 upstream
    # so the MXU is actually filled.
    return jnp.dot(w.astype(jnp.bfloat16), x.astype(jnp.bfloat16),
                   preferred_element_type=jnp.float32)


def _convblock_kernel(x_ref, w1_ref, b1_ref, w2_ref, b2_ref, mask_ref,
                      w3_ref, b3_ref, o_ref,
                      *, H, W, KH, KW, stride, padding, residual):
    # x_ref:    (1, C_in, H*W)     input, spatial flattened into the lane axis
    # w1_ref:   (C_mid, C_in)      f32   1x1 conv1 weight  (BN1 scale folded in)
    # w2_ref:   (C_mid, KH*KW)     f32   depthwise weight  (BN2 scale folded in)
    # w3_ref:   (C_out, C_mid)     f32   1x1 conv3 weight  (BN3 scale folded in)
    # b*_ref:   (C, 1)             f32   folded BatchNorm bias
    # mask_ref: (KH*KW, H*W)       f32   per-tap 0/1 validity masks
    # o_ref:    (1, C_out, Ho*Wo)
    HW = H * W
    x = x_ref[0].astype(jnp.float32)                            # (C_in, HW)

    # ---- conv1: 1x1 pointwise (C_in -> C_mid) + BN1 bias + ReLU -------------
    y1 = jnp.maximum(_pointwise(w1_ref[...], x) + b1_ref[...], 0.0)
    C_mid = y1.shape[0]

    # ---- conv2: depthwise KHxKW + BN2 bias + ReLU ----------------------------
    # Per-channel filter => VPU multiply-accumulate; spatial shifts via
    # pltpu.roll (XLU) on the flattened lane axis, wrap-around killed by the
    # precomputed per-tap masks.  Two accumulators expose ILP.
    w2 = w2_ref[...]                                            # (C_mid, KH*KW)
    mask = mask_ref[...]                                        # (KH*KW, HW)
    accs = [jnp.zeros((C_mid, HW), jnp.float32),
            jnp.zeros((C_mid, HW), jnp.float32)]
    idx = 0
    for kh in range(KH):                                        # fully unrolled
        dh = kh - padding
        for kw in range(KW):
            dw = kw - padding
            t = kh * KW + kw
            off = dh * W + dw
            tap_w = w2[:, t:t + 1]                              # (C_mid, 1)
            if off == 0:
                contrib = y1 * tap_w
            else:
                # roll shift must be non-negative: (-off) % HW is the same
                # rotation; invalid (wrapped) lanes are zeroed by the mask.
                shifted = pltpu.roll(y1, shift=(-off) % HW, axis=1)
                contrib = shifted * (tap_w * mask[t:t + 1, :])
            accs[idx % 2] = accs[idx % 2] + contrib
            idx += 1
    y2 = jnp.maximum(accs[0] + accs[1] + b2_ref[...], 0.0)      # (C_mid, HW)

    if stride != 1:
        # TODO(synk): stride-2 path (not exercised here) still decimates after a
        # same-padded depthwise pass; compute only strided output positions and
        # keep the output lane dim a multiple of 128 before enabling this.
        Ho = (H - 1) // stride + 1
        Wo = (W - 1) // stride + 1
        y2 = y2.reshape(C_mid, H, W)[:, ::stride, ::stride].reshape(C_mid, Ho * Wo)

    # ---- conv3: 1x1 pointwise (C_mid -> C_out) + BN3 bias (no ReLU) ---------
    y3 = _pointwise(w3_ref[...], y2) + b3_ref[...]

    if residual:                       # C_in == C_out and stride == 1
        y3 = y3 + x

    o_ref[0] = y3.astype(o_ref.dtype)


def conv_block_forward(x_nchw, w1, bn1, w2, bn2, w3, bn3,
                       *, expansion, kernel_size, stride, padding=None,
                       dilation=1, groups=1, eps=1e-5):
    """ConvBlock.forward (eval-mode BatchNorm) as one fused Pallas TPU kernel."""
    N, C_in, H, W = x_nchw.shape
    C_mid = C_in * expansion
    C_out = w3.shape[0]
    KH = KW = kernel_size
    if padding is None:
        padding = int(np.ceil((dilation * (kernel_size - 1) + 1 - stride) / 2.0))

    assert dilation == 1, "dilation > 1 not supported"
    # TODO(synk): groups > 1 path (grouped 1x1 convs + ChannelShuffle) not implemented.
    assert groups == 1, "groups > 1 not supported in the Pallas path"
    assert stride in (1, 2)
    assert padding == (kernel_size - 1) // 2
    assert w1.shape == (C_mid, C_in, 1, 1)
    assert w2.shape == (C_mid, 1, KH, KW)
    assert w3.shape == (C_out, C_mid, 1, 1)

    Ho = (H + 2 * padding - KH) // stride + 1
    Wo = (W + 2 * padding - KW) // stride + 1
    HW = H * W
    residual = (C_in == C_out) and (stride == 1)

    # ---- wrapper glue: metadata-only reshape + tiny weight/mask prep ---------
    x2d = x_nchw.reshape(N, C_in, HW)            # contiguous reshape: no HBM pass

    def fold_bn(bn):
        gamma, beta, mean, var = bn
        s = (gamma / jnp.sqrt(var + eps)).astype(jnp.float32)
        b = (beta - mean * s).astype(jnp.float32)
        return s, b

    s1, b1 = fold_bn(bn1)
    s2, b2 = fold_bn(bn2)
    s3, b3 = fold_bn(bn3)

    # Fold BN scales into the conv weights (exact, f32); only biases go in-kernel.
    w1m = (w1.reshape(C_mid, C_in) * s1[:, None]).astype(jnp.float32)
    w2m = (w2.reshape(C_mid, KH * KW) * s2[:, None]).astype(jnp.float32)
    w3m = (w3.reshape(C_out, C_mid) * s3[:, None]).astype(jnp.float32)
    b1 = b1[:, None]
    b2 = b2[:, None]
    b3 = b3[:, None]

    # Precomputed per-tap 0/1 boundary masks (host-side, tiny).
    hh = np.arange(HW) // W
    ww = np.arange(HW) % W
    mask_rows = []
    for kh in range(KH):
        dh = kh - padding
        for kw in range(KW):
            dw = kw - padding
            valid = ((hh + dh >= 0) & (hh + dh < H) &
                     (ww + dw >= 0) & (ww + dw < W))
            mask_rows.append(valid.astype(np.float32))
    mask = jnp.asarray(np.stack(mask_rows, axis=0))              # (KH*KW, HW)

    kernel = functools.partial(_convblock_kernel, H=H, W=W, KH=KH, KW=KW,
                               stride=stride, padding=padding, residual=residual)

    const2 = lambda n: (0, 0)

    out2d = pl.pallas_call(
        kernel,
        out_shape=jax.ShapeDtypeStruct((N, C_out, Ho * Wo), x_nchw.dtype),
        grid_spec=pltpu.PrefetchScalarGridSpec(
            num_scalar_prefetch=0,
            grid=(N,),
            in_specs=[
                pl.BlockSpec((1, C_in, HW), lambda n: (n, 0, 0)),
                pl.BlockSpec((C_mid, C_in), const2),
                pl.BlockSpec((C_mid, 1), const2),
                pl.BlockSpec((C_mid, KH * KW), const2),
                pl.BlockSpec((C_mid, 1), const2),
                pl.BlockSpec((KH * KW, HW), const2),
                pl.BlockSpec((C_out, C_mid), const2),
                pl.BlockSpec((C_out, 1), const2),
            ],
            out_specs=pl.BlockSpec((1, C_out, Ho * Wo), lambda n: (n, 0, 0)),
        ),
        compiler_params=pltpu.CompilerParams(
            dimension_semantics=("parallel",),
            vmem_limit_bytes=32 * 1024 * 1024),
    )(x2d, w1m, b1, w2m, b2, mask, w3m, b3)

    return out2d.reshape(N, C_out, Ho, Wo)       # contiguous reshape: no HBM pass


def _reference(x, w1, bn1, w2, bn2, w3, bn3, *, stride, padding, eps=1e-5):
    """Pure-JAX (f32) reference matching the PyTorch ConvBlock in eval mode."""
    def bn(y, p):
        gamma, beta, mean, var = p
        s = gamma / jnp.sqrt(var + eps)
        return y * s[None, :, None, None] + (beta - mean * s)[None, :, None, None]

    dn = ("NCHW", "OIHW", "NCHW")
    y = jax.lax.conv_general_dilated(x, w1, (1, 1), "VALID", dimension_numbers=dn)
    y = jnp.maximum(bn(y, bn1), 0.0)
    y = jax.lax.conv_general_dilated(
        y, w2, (stride, stride), ((padding, padding), (padding, padding)),
        dimension_numbers=dn, feature_group_count=w2.shape[0])
    y = jnp.maximum(bn(y, bn2), 0.0)
    y = jax.lax.conv_general_dilated(y, w3, (1, 1), "VALID", dimension_numbers=dn)
    y = bn(y, bn3)
    if x.shape[1] == y.shape[1] and stride == 1:
        y = y + x
    return y


if __name__ == "__main__":
    # ConvBlock(C_in=4, C_out=4, layer_id=1, expansion=2, kernel_size=3, stride=1)
    # -> padding = 1, groups = 1, bias = False; residual branch is active.
    N, C_in, H, W = 2, 4, 16, 16
    C_out, expansion, K, stride = 4, 2, 3, 1
    C_mid = C_in * expansion

    key = jax.random.PRNGKey(0)
    keys = jax.random.split(key, 16)

    x = jax.random.normal(keys[0], (N, C_in, H, W), dtype=jnp.float32)

    w1 = jax.random.normal(keys[1], (C_mid, C_in, 1, 1), dtype=jnp.float32) * 0.1
    w2 = jax.random.normal(keys[2], (C_mid, 1, K, K), dtype=jnp.float32) * 0.1
    w3 = jax.random.normal(keys[3], (C_out, C_mid, 1, 1), dtype=jnp.float32) * 0.1

    def bn_params(kg, kb, km, kv, C):
        gamma = 1.0 + 0.1 * jax.random.normal(kg, (C,), dtype=jnp.float32)
        beta = 0.1 * jax.random.normal(kb, (C,), dtype=jnp.float32)
        mean = 0.1 * jax.random.normal(km, (C,), dtype=jnp.float32)
        var = 1.0 + 0.1 * jnp.abs(jax.random.normal(kv, (C,), dtype=jnp.float32))
        return gamma, beta, mean, var

    bn1 = bn_params(keys[4], keys[5], keys[6], keys[7], C_mid)
    bn2 = bn_params(keys[8], keys[9], keys[10], keys[11], C_mid)
    bn3 = bn_params(keys[12], keys[13], keys[14], keys[15], C_out)

    out = conv_block_forward(x, w1, bn1, w2, bn2, w3, bn3,
                             expansion=expansion, kernel_size=K, stride=stride)
    out = jax.block_until_ready(out)

    ref = _reference(x, w1, bn1, w2, bn2, w3, bn3, stride=stride, padding=1)
    np.testing.assert_allclose(np.asarray(out), np.asarray(ref),
                               rtol=1e-2, atol=1e-2)

    print("KERNEL_OK")
</pallas_src>

<mosaic_0001>
module attributes {stable_mosaic.version = 11 : i64} {
  func.func @_convblock_kernel(%arg0: i32, %arg1: memref<1x4x256xf32, #tpu.memory_space<vmem>>, %arg2: memref<8x4xf32, #tpu.memory_space<vmem>>, %arg3: memref<8x1xf32, #tpu.memory_space<vmem>>, %arg4: memref<8x9xf32, #tpu.memory_space<vmem>>, %arg5: memref<8x1xf32, #tpu.memory_space<vmem>>, %arg6: memref<9x256xf32, #tpu.memory_space<vmem>>, %arg7: memref<4x8xf32, #tpu.memory_space<vmem>>, %arg8: memref<4x1xf32, #tpu.memory_space<vmem>>, %arg9: memref<1x4x256xf32, #tpu.memory_space<vmem>>) attributes {dimension_semantics = [#tpu.dimension_semantics<parallel>], iteration_bounds = array<i64: 2>, scalar_prefetch = 0 : i64, scratch_operands = 0 : i64, tpu.core_type = #tpu.core_type<tc>, window_params = [{transform_indices = @transform_0, window_bounds = array<i64: 1, 4, 256>}, {pipeline_mode = #tpu.pipeline_mode<synchronous>, transform_indices = @transform_1, window_bounds = array<i64: 8, 4>}, {pipeline_mode = #tpu.pipeline_mode<synchronous>, transform_indices = @transform_2, window_bounds = array<i64: 8, 1>}, {pipeline_mode = #tpu.pipeline_mode<synchronous>, transform_indices = @transform_3, window_bounds = array<i64: 8, 9>}, {pipeline_mode = #tpu.pipeline_mode<synchronous>, transform_indices = @transform_4, window_bounds = array<i64: 8, 1>}, {pipeline_mode = #tpu.pipeline_mode<synchronous>, transform_indices = @transform_5, window_bounds = array<i64: 9, 256>}, {pipeline_mode = #tpu.pipeline_mode<synchronous>, transform_indices = @transform_6, window_bounds = array<i64: 4, 8>}, {pipeline_mode = #tpu.pipeline_mode<synchronous>, transform_indices = @transform_7, window_bounds = array<i64: 4, 1>}, {transform_indices = @transform_8, window_bounds = array<i64: 1, 4, 256>}]} {
    %c0 = arith.constant 0 : index
    %c0_0 = arith.constant 0 : index
    %c0_1 = arith.constant 0 : index
    %0 = vector.load %arg1[%c0, %c0_0, %c0_1] : memref<1x4x256xf32, #tpu.memory_space<vmem>>, vector<1x4x256xf32>
    %1 = vector.shape_cast %0 : vector<1x4x256xf32> to vector<4x256xf32>
    %c0_2 = arith.constant 0 : index
    %c0_3 = arith.constant 0 : index
    %2 = vector.load %arg2[%c0_2, %c0_3] : memref<8x4xf32, #tpu.memory_space<vmem>>, vector<8x4xf32>
    %3 = vector.extract_strided_slice %2 {offsets = [0, 0], sizes = [8, 1], strides = [1, 1]} : vector<8x4xf32> to vector<8x1xf32>
    %4 = vector.extract_strided_slice %1 {offsets = [0, 0], sizes = [1, 256], strides = [1, 1]} : vector<4x256xf32> to vector<1x256xf32>
    %5 = vector.broadcast %3 : vector<8x1xf32> to vector<8x256xf32>
    %6 = vector.broadcast %4 : vector<1x256xf32> to vector<8x256xf32>
    %7 = arith.mulf %5, %6 : vector<8x256xf32>
    %8 = vector.extract_strided_slice %2 {offsets = [0, 1], sizes = [8, 1], strides = [1, 1]} : vector<8x4xf32> to vector<8x1xf32>
    %9 = vector.extract_strided_slice %1 {offsets = [1, 0], sizes = [1, 256], strides = [1, 1]} : vector<4x256xf32> to vector<1x256xf32>
    %10 = vector.broadcast %8 : vector<8x1xf32> to vector<8x256xf32>
    %11 = vector.broadcast %9 : vector<1x256xf32> to vector<8x256xf32>
    %12 = arith.mulf %10, %11 : vector<8x256xf32>
    %13 = vector.extract_strided_slice %2 {offsets = [0, 2], sizes = [8, 1], strides = [1, 1]} : vector<8x4xf32> to vector<8x1xf32>
    %14 = vector.extract_strided_slice %1 {offsets = [2, 0], sizes = [1, 256], strides = [1, 1]} : vector<4x256xf32> to vector<1x256xf32>
    %15 = vector.broadcast %13 : vector<8x1xf32> to vector<8x256xf32>
    %16 = vector.broadcast %14 : vector<1x256xf32> to vector<8x256xf32>
    %17 = arith.mulf %15, %16 : vector<8x256xf32>
    %18 = arith.addf %7, %17 : vector<8x256xf32>
    %19 = vector.extract_strided_slice %2 {offsets = [0, 3], sizes = [8, 1], strides = [1, 1]} : vector<8x4xf32> to vector<8x1xf32>
    %20 = vector.extract_strided_slice %1 {offsets = [3, 0], sizes = [1, 256], strides = [1, 1]} : vector<4x256xf32> to vector<1x256xf32>
    %21 = vector.broadcast %19 : vector<8x1xf32> to vector<8x256xf32>
    %22 = vector.broadcast %20 : vector<1x256xf32> to vector<8x256xf32>
    %23 = arith.mulf %21, %22 : vector<8x256xf32>
    %24 = arith.addf %12, %23 : vector<8x256xf32>
    %25 = arith.addf %18, %24 : vector<8x256xf32>
    %c0_4 = arith.constant 0 : index
    %c0_5 = arith.constant 0 : index
    %26 = vector.load %arg3[%c0_4, %c0_5] : memref<8x1xf32, #tpu.memory_space<vmem>>, vector<8x1xf32>
    %27 = vector.broadcast %26 : vector<8x1xf32> to vector<8x256xf32>
    %28 = arith.addf %25, %27 : vector<8x256xf32>
    %cst = arith.constant 0.000000e+00 : f32
    %29 = vector.broadcast %cst : f32 to vector<8x256xf32>
    %30 = arith.maximumf %28, %29 : vector<8x256xf32>
    %c0_6 = arith.constant 0 : index
    %c0_7 = arith.constant 0 : index
    %31 = vector.load %arg4[%c0_6, %c0_7] : memref<8x9xf32, #tpu.memory_space<vmem>>, vector<8x9xf32>
    %c0_8 = arith.constant 0 : index
    %c0_9 = arith.constant 0 : index
    %32 = vector.load %arg6[%c0_8, %c0_9] : memref<9x256xf32, #tpu.memory_space<vmem>>, vector<9x256xf32>
    %cst_10 = arith.constant 0.000000e+00 : f32
    %33 = vector.broadcast %cst_10 : f32 to vector<8x256xf32>
    %cst_11 = arith.constant 0.000000e+00 : f32
    %34 = vector.broadcast %cst_11 : f32 to vector<8x256xf32>
    %35 = vector.extract_strided_slice %31 {offsets = [0, 0], sizes = [8, 1], strides = [1, 1]} : vector<8x9xf32> to vector<8x1xf32>
    %c17_i32 = arith.constant 17 : i32
    %36 = tpu.dynamic_rotate %30 by %c17_i32 dim 1 : vector<8x256xf32>, i32 -> vector<8x256xf32>
    %37 = vector.extract_strided_slice %32 {offsets = [0, 0], sizes = [1, 256], strides = [1, 1]} : vector<9x256xf32> to vector<1x256xf32>
    %38 = vector.broadcast %35 : vector<8x1xf32> to vector<8x256xf32>
    %39 = vector.broadcast %37 : vector<1x256xf32> to vector<8x256xf32>
    %40 = arith.mulf %38, %39 : vector<8x256xf32>
    %41 = arith.mulf %36, %40 : vector<8x256xf32>
    %42 = arith.addf %33, %41 : vector<8x256xf32>
    %43 = vector.extract_strided_slice %31 {offsets = [0, 1], sizes = [8, 1], strides = [1, 1]} : vector<8x9xf32> to vector<8x1xf32>
    %c16_i32 = arith.constant 16 : i32
    %44 = tpu.dynamic_rotate %30 by %c16_i32 dim 1 : vector<8x256xf32>, i32 -> vector<8x256xf32>
    %45 = vector.extract_strided_slice %32 {offsets = [1, 0], sizes = [1, 256], strides = [1, 1]} : vector<9x256xf32> to vector<1x256xf32>
    %46 = vector.broadcast %43 : vector<8x1xf32> to vector<8x256xf32>
    %47 = vector.broadcast %45 : vector<1x256xf32> to vector<8x256xf32>
    %48 = arith.mulf %46, %47 : vector<8x256xf32>
    %49 = arith.mulf %44, %48 : vector<8x256xf32>
    %50 = arith.addf %34, %49 : vector<8x256xf32>
    %51 = vector.extract_strided_slice %31 {offsets = [0, 2], sizes = [8, 1], strides = [1, 1]} : vector<8x9xf32> to vector<8x1xf32>
    %c15_i32 = arith.constant 15 : i32
    %52 = tpu.dynamic_rotate %30 by %c15_i32 dim 1 : vector<8x256xf32>, i32 -> vector<8x256xf32>
    %53 = vector.extract_strided_slice %32 {offsets = [2, 0], sizes = [1, 256], strides = [1, 1]} : vector<9x256xf32> to vector<1x256xf32>
    %54 = vector.broadcast %51 : vector<8x1xf32> to vector<8x256xf32>
    %55 = vector.broadcast %53 : vector<1x256xf32> to vector<8x256xf32>
    %56 = arith.mulf %54, %55 : vector<8x256xf32>
    %57 = arith.mulf %52, %56 : vector<8x256xf32>
    %58 = arith.addf %42, %57 : vector<8x256xf32>
    %59 = vector.extract_strided_slice %31 {offsets = [0, 3], sizes = [8, 1], strides = [1, 1]} : vector<8x9xf32> to vector<8x1xf32>
    %c1_i32 = arith.constant 1 : i32
    %60 = tpu.dynamic_rotate %30 by %c1_i32 dim 1 : vector<8x256xf32>, i32 -> vector<8x256xf32>
    %61 = vector.extract_strided_slice %32 {offsets = [3, 0], sizes = [1, 256], strides = [1, 1]} : vector<9x256xf32> to vector<1x256xf32>
    %62 = vector.broadcast %59 : vector<8x1xf32> to vector<8x256xf32>
    %63 = vector.broadcast %61 : vector<1x256xf32> to vector<8x256xf32>
    %64 = arith.mulf %62, %63 : vector<8x256xf32>
    %65 = arith.mulf %60, %64 : vector<8x256xf32>
    %66 = arith.addf %50, %65 : vector<8x256xf32>
    %67 = vector.extract_strided_slice %31 {offsets = [0, 4], sizes = [8, 1], strides = [1, 1]} : vector<8x9xf32> to vector<8x1xf32>
    %68 = vector.broadcast %67 : vector<8x1xf32> to vector<8x256xf32>
    %69 = arith.mulf %30, %68 : vector<8x256xf32>
    %70 = arith.addf %58, %69 : vector<8x256xf32>
    %71 = vector.extract_strided_slice %31 {offsets = [0, 5], sizes = [8, 1], strides = [1, 1]} : vector<8x9xf32> to vector<8x1xf32>
    %c255_i32 = arith.constant 255 : i32
    %72 = tpu.dynamic_rotate %30 by %c255_i32 dim 1 : vector<8x256xf32>, i32 -> vector<8x256xf32>
    %73 = vector.extract_strided_slice %32 {offsets = [5, 0], sizes = [1, 256], strides = [1, 1]} : vector<9x256xf32> to vector<1x256xf32>
    %74 = vector.broadcast %71 : vector<8x1xf32> to vector<8x256xf32>
    %75 = vector.broadcast %73 : vector<1x256xf32> to vector<8x256xf32>
    %76 = arith.mulf %74, %75 : vector<8x256xf32>
    %77 = arith.mulf %72, %76 : vector<8x256xf32>
    %78 = arith.addf %66, %77 : vector<8x256xf32>
    %79 = vector.extract_strided_slice %31 {offsets = [0, 6], sizes = [8, 1], strides = [1, 1]} : vector<8x9xf32> to vector<8x1xf32>
    %c241_i32 = arith.constant 241 : i32
    %80 = tpu.dynamic_rotate %30 by %c241_i32 dim 1 : vector<8x256xf32>, i32 -> vector<8x256xf32>
    %81 = vector.extract_strided_slice %32 {offsets = [6, 0], sizes = [1, 256], strides = [1, 1]} : vector<9x256xf32> to vector<1x256xf32>
    %82 = vector.broadcast %79 : vector<8x1xf32> to vector<8x256xf32>
    %83 = vector.broadcast %81 : vector<1x256xf32> to vector<8x256xf32>
    %84 = arith.mulf %82, %83 : vector<8x256xf32>
    %85 = arith.mulf %80, %84 : vector<8x256xf32>
    %86 = arith.addf %70, %85 : vector<8x256xf32>
    %87 = vector.extract_strided_slice %31 {offsets = [0, 7], sizes = [8, 1], strides = [1, 1]} : vector<8x9xf32> to vector<8x1xf32>
    %c240_i32 = arith.constant 240 : i32
    %88 = tpu.dynamic_rotate %30 by %c240_i32 dim 1 : vector<8x256xf32>, i32 -> vector<8x256xf32>
    %89 = vector.extract_strided_slice %32 {offsets = [7, 0], sizes = [1, 256], strides = [1, 1]} : vector<9x256xf32> to vector<1x256xf32>
    %90 = vector.broadcast %87 : vector<8x1xf32> to vector<8x256xf32>
    %91 = vector.broadcast %89 : vector<1x256xf32> to vector<8x256xf32>
    %92 = arith.mulf %90, %91 : vector<8x256xf32>
    %93 = arith.mulf %88, %92 : vector<8x256xf32>
    %94 = arith.addf %78, %93 : vector<8x256xf32>
    %95 = vector.extract_strided_slice %31 {offsets = [0, 8], sizes = [8, 1], strides = [1, 1]} : vector<8x9xf32> to vector<8x1xf32>
    %c239_i32 = arith.constant 239 : i32
    %96 = tpu.dynamic_rotate %30 by %c239_i32 dim 1 : vector<8x256xf32>, i32 -> vector<8x256xf32>
    %97 = vector.extract_strided_slice %32 {offsets = [8, 0], sizes = [1, 256], strides = [1, 1]} : vector<9x256xf32> to vector<1x256xf32>
    %98 = vector.broadcast %95 : vector<8x1xf32> to vector<8x256xf32>
    %99 = vector.broadcast %97 : vector<1x256xf32> to vector<8x256xf32>
    %100 = arith.mulf %98, %99 : vector<8x256xf32>
    %101 = arith.mulf %96, %100 : vector<8x256xf32>
    %102 = arith.addf %86, %101 : vector<8x256xf32>
    %103 = arith.addf %102, %94 : vector<8x256xf32>
    %c0_12 = arith.constant 0 : index
    %c0_13 = arith.constant 0 : index
    %104 = vector.load %arg5[%c0_12, %c0_13] : memref<8x1xf32, #tpu.memory_space<vmem>>, vector<8x1xf32>
    %105 = vector.broadcast %104 : vector<8x1xf32> to vector<8x256xf32>
    %106 = arith.addf %103, %105 : vector<8x256xf32>
    %cst_14 = arith.constant 0.000000e+00 : f32
    %107 = vector.broadcast %cst_14 : f32 to vector<8x256xf32>
    %108 = arith.maximumf %106, %107 : vector<8x256xf32>
    %c0_15 = arith.constant 0 : index
    %c0_16 = arith.constant 0 : index
    %109 = vector.load %arg7[%c0_15, %c0_16] : memref<4x8xf32, #tpu.memory_space<vmem>>, vector<4x8xf32>
    %110 = vector.extract_strided_slice %109 {offsets = [0, 0], sizes = [4, 1], strides = [1, 1]} : vector<4x8xf32> to vector<4x1xf32>
    %111 = vector.extract_strided_slice %108 {offsets = [0, 0], sizes = [1, 256], strides = [1, 1]} : vector<8x256xf32> to vector<1x256xf32>
    %112 = vector.broadcast %110 : vector<4x1xf32> to vector<4x256xf32>
    %113 = vector.broadcast %111 : vector<1x256xf32> to vector<4x256xf32>
    %114 = arith.mulf %112, %113 : vector<4x256xf32>
    %115 = vector.extract_strided_slice %109 {offsets = [0, 1], sizes = [4, 1], strides = [1, 1]} : vector<4x8xf32> to vector<4x1xf32>
    %116 = vector.extract_strided_slice %108 {offsets = [1, 0], sizes = [1, 256], strides = [1, 1]} : vector<8x256xf32> to vector<1x256xf32>
    %117 = vector.broadcast %115 : vector<4x1xf32> to vector<4x256xf32>
    %118 = vector.broadcast %116 : vector<1x256xf32> to vector<4x256xf32>
    %119 = arith.mulf %117, %118 : vector<4x256xf32>
    %120 = vector.extract_strided_slice %109 {offsets = [0, 2], sizes = [4, 1], strides = [1, 1]} : vector<4x8xf32> to vector<4x1xf32>
    %121 = vector.extract_strided_slice %108 {offsets = [2, 0], sizes = [1, 256], strides = [1, 1]} : vector<8x256xf32> to vector<1x256xf32>
    %122 = vector.broadcast %120 : vector<4x1xf32> to vector<4x256xf32>
    %123 = vector.broadcast %121 : vector<1x256xf32> to vector<4x256xf32>
    %124 = arith.mulf %122, %123 : vector<4x256xf32>
    %125 = arith.addf %114, %124 : vector<4x256xf32>
    %126 = vector.extract_strided_slice %109 {offsets = [0, 3], sizes = [4, 1], strides = [1, 1]} : vector<4x8xf32> to vector<4x1xf32>
    %127 = vector.extract_strided_slice %108 {offsets = [3, 0], sizes = [1, 256], strides = [1, 1]} : vector<8x256xf32> to vector<1x256xf32>
    %128 = vector.broadcast %126 : vector<4x1xf32> to vector<4x256xf32>
    %129 = vector.broadcast %127 : vector<1x256xf32> to vector<4x256xf32>
    %130 = arith.mulf %128, %129 : vector<4x256xf32>
    %131 = arith.addf %119, %130 : vector<4x256xf32>
    %132 = vector.extract_strided_slice %109 {offsets = [0, 4], sizes = [4, 1], strides = [1, 1]} : vector<4x8xf32> to vector<4x1xf32>
    %133 = vector.extract_strided_slice %108 {offsets = [4, 0], sizes = [1, 256], strides = [1, 1]} : vector<8x256xf32> to vector<1x256xf32>
    %134 = vector.broadcast %132 : vector<4x1xf32> to vector<4x256xf32>
    %135 = vector.broadcast %133 : vector<1x256xf32> to vector<4x256xf32>
    %136 = arith.mulf %134, %135 : vector<4x256xf32>
    %137 = arith.addf %125, %136 : vector<4x256xf32>
    %138 = vector.extract_strided_slice %109 {offsets = [0, 5], sizes = [4, 1], strides = [1, 1]} : vector<4x8xf32> to vector<4x1xf32>
    %139 = vector.extract_strided_slice %108 {offsets = [5, 0], sizes = [1, 256], strides = [1, 1]} : vector<8x256xf32> to vector<1x256xf32>
    %140 = vector.broadcast %138 : vector<4x1xf32> to vector<4x256xf32>
    %141 = vector.broadcast %139 : vector<1x256xf32> to vector<4x256xf32>
    %142 = arith.mulf %140, %141 : vector<4x256xf32>
    %143 = arith.addf %131, %142 : vector<4x256xf32>
    %144 = vector.extract_strided_slice %109 {offsets = [0, 6], sizes = [4, 1], strides = [1, 1]} : vector<4x8xf32> to vector<4x1xf32>
    %145 = vector.extract_strided_slice %108 {offsets = [6, 0], sizes = [1, 256], strides = [1, 1]} : vector<8x256xf32> to vector<1x256xf32>
    %146 = vector.broadcast %144 : vector<4x1xf32> to vector<4x256xf32>
    %147 = vector.broadcast %145 : vector<1x256xf32> to vector<4x256xf32>
    %148 = arith.mulf %146, %147 : vector<4x256xf32>
    %149 = arith.addf %137, %148 : vector<4x256xf32>
    %150 = vector.extract_strided_slice %109 {offsets = [0, 7], sizes = [4, 1], strides = [1, 1]} : vector<4x8xf32> to vector<4x1xf32>
    %151 = vector.extract_strided_slice %108 {offsets = [7, 0], sizes = [1, 256], strides = [1, 1]} : vector<8x256xf32> to vector<1x256xf32>
    %152 = vector.broadcast %150 : vector<4x1xf32> to vector<4x256xf32>
    %153 = vector.broadcast %151 : vector<1x256xf32> to vector<4x256xf32>
    %154 = arith.mulf %152, %153 : vector<4x256xf32>
    %155 = arith.addf %143, %154 : vector<4x256xf32>
    %156 = arith.addf %149, %155 : vector<4x256xf32>
    %c0_17 = arith.constant 0 : index
    %c0_18 = arith.constant 0 : index
    %157 = vector.load %arg8[%c0_17, %c0_18] : memref<4x1xf32, #tpu.memory_space<vmem>>, vector<4x1xf32>
    %158 = vector.broadcast %157 : vector<4x1xf32> to vector<4x256xf32>
    %159 = arith.addf %156, %158 : vector<4x256xf32>
    %160 = arith.addf %159, %1 : vector<4x256xf32>
    %c0_19 = arith.constant 0 : index
    %c0_20 = arith.constant 0 : index
    %c0_21 = arith.constant 0 : index
    %161 = vector.load %arg9[%c0_19, %c0_20, %c0_21] : memref<1x4x256xf32, #tpu.memory_space<vmem>>, vector<1x4x256xf32>
    %162 = vector.shape_cast %161 : vector<1x4x256xf32> to vector<4x256xf32>
    %163 = vector.shape_cast %160 : vector<4x256xf32> to vector<1x4x256xf32>
    tpu.vector_store %arg9[%c0_19, %c0_20, %c0_21], %163 {strides = array<i32>} : memref<1x4x256xf32, #tpu.memory_space<vmem>>, vector<1x4x256xf32>,
    return
  }
  func.func @transform_0(%arg0: i32) -> (i32, i32, i32) {
    %c0_i32 = arith.constant 0 : i32
    %c0_i32_0 = arith.constant 0 : i32
    %c0_i32_1 = arith.constant 0 : i32
    return %arg0, %c0_i32, %c0_i32_0 : i32, i32, i32
  }
  func.func @transform_1(%arg0: i32) -> (i32, i32) {
    %c0_i32 = arith.constant 0 : i32
    %c0_i32_0 = arith.constant 0 : i32
    %c0_i32_1 = arith.constant 0 : i32
    return %c0_i32, %c0_i32_0 : i32, i32
  }
  func.func @transform_2(%arg0: i32) -> (i32, i32) {
    %c0_i32 = arith.constant 0 : i32
    %c0_i32_0 = arith.constant 0 : i32
    %c0_i32_1 = arith.constant 0 : i32
    return %c0_i32, %c0_i32_0 : i32, i32
  }
  func.func @transform_3(%arg0: i32) -> (i32, i32) {
    %c0_i32 = arith.constant 0 : i32
    %c0_i32_0 = arith.constant 0 : i32
    %c0_i32_1 = arith.constant 0 : i32
    return %c0_i32, %c0_i32_0 : i32, i32
  }
  func.func @transform_4(%arg0: i32) -> (i32, i32) {
    %c0_i32 = arith.constant 0 : i32
    %c0_i32_0 = arith.constant 0 : i32
    %c0_i32_1 = arith.constant 0 : i32
    return %c0_i32, %c0_i32_0 : i32, i32
  }
  func.func @transform_5(%arg0: i32) -> (i32, i32) {
    %c0_i32 = arith.constant 0 : i32
    %c0_i32_0 = arith.constant 0 : i32
    %c0_i32_1 = arith.constant 0 : i32
    return %c0_i32, %c0_i32_0 : i32, i32
  }
  func.func @transform_6(%arg0: i32) -> (i32, i32) {
    %c0_i32 = arith.constant 0 : i32
    %c0_i32_0 = arith.constant 0 : i32
    %c0_i32_1 = arith.constant 0 : i32
    return %c0_i32, %c0_i32_0 : i32, i32
  }
  func.func @transform_7(%arg0: i32) -> (i32, i32) {
    %c0_i32 = arith.constant 0 : i32
    %c0_i32_0 = arith.constant 0 : i32
    %c0_i32_1 = arith.constant 0 : i32
    return %c0_i32, %c0_i32_0 : i32, i32
  }
  func.func @transform_8(%arg0: i32) -> (i32, i32, i32) {
    %c0_i32 = arith.constant 0 : i32
    %c0_i32_0 = arith.constant 0 : i32
    %c0_i32_1 = arith.constant 0 : i32
    return %arg0, %c0_i32, %c0_i32_0 : i32, i32, i32
  }
}

</mosaic_0001>

<llo_original>
// kernel: tpu_custom_call.1
$region0: #{tpu_custom_call.1}
  #allocation0 [shape = 'u32[]', space=smem, size = 0x4, offset = 0x4, fixed_abs, tag = 'smem constant byte address 0x4 - core index']
  #allocation1 [shape = 'u32[144,128]{1,0:T(1,128)}', space=vmem, size = 0x12000, scoped, tag = 'internal scratch']
  %s0 = inlined_call_operand.hbm [shape: f32[2,4,256], index: 0, kind: input, shape index: {}]
  %s1 = inlined_call_operand.vmem [shape: f32[8,4], index: 1, kind: input, shape index: {}]
  %s2 = inlined_call_operand.vmem [shape: f32[8,1], index: 2, kind: input, shape index: {}]
  %s3 = inlined_call_operand.vmem [shape: f32[8,9], index: 3, kind: input, shape index: {}]
  %s4 = inlined_call_operand.vmem [shape: f32[8,1], index: 4, kind: input, shape index: {}]
  %s5 = inlined_call_operand.vmem [shape: f32[9,256], index: 5, kind: input, shape index: {}]
  %s6 = inlined_call_operand.vmem [shape: f32[4,8], index: 6, kind: input, shape index: {}]
  %s7 = inlined_call_operand.vmem [shape: f32[4,1], index: 7, kind: input, shape index: {}]
  %s8 = inlined_call_operand.hbm [shape: f32[2,4,256], index: 8, kind: output, shape index: {}]
  %s9 = sld [smem:[#allocation0]]
  $region69: #{tpu_custom_call.1} parent=0
    _
  %s11 = ssub.s32 1, %s9
  %s12 = scalar_select 0, %s11, %s9
  $region1: #{tpu_custom_call.1} parent=0
    #allocation2 [shape = 'u8[8192]{0}', space=vmem, size = 0x2000, scoped, tag = 'input window, operand 0']
    #allocation3 [shape = 's32[2]{0}', space=sflag, size = 0x8, scoped, tag = 'scoped memory for tpu_custom_call.1']
    #allocation4 [shape = 's32[2]{0}', space=sflag, size = 0x8, scoped, tag = 'scoped memory for tpu_custom_call.1']
    #allocation5 [shape = 'u8[8192]{0}', space=vmem, size = 0x2000, scoped, tag = 'output window, operand 0']
    %13 = vsyncpa [#allocation3], 0
    %s14 = scalar_lea.sflag [#allocation3], 1
    %15 = vsyncpa %s14, 0
    %16 = vsyncpa [#allocation4], 0
    %s17 = scalar_lea.sflag [#allocation4], 1
    %18 = vsyncpa %s17, 0
    loop: start=0, step=1, limit=4
    $region2: #{tpu_custom_call.1} parent=1 // loop_pre_header
      _
    $region3: #{tpu_custom_call.1} parent=1 // loop_header
      %s20 = sphi 0, %s24
      %p21 = scmp.ge.s32.totalorder %s20, 4
      %s30 = sphi 0, %s32
      %s33 = sphi 0, %s30
      %s34 = sphi 0, %s33
      %s50 = sphi 0, %s34
      %s54 = sphi 0, %s54
      %s56 = sphi 0, %s54
      %s57 = sphi 0, %s56
      %s71 = sphi 0, %s57
      %s75 = sphi 0, %s75
      %s77 = sphi 0, %s75
      %s78 = sphi 0, %s77
      %s92 = sphi 0, %s78
      %s96 = sphi 0, %s96
      %s98 = sphi 0, %s96
      %s99 = sphi 0, %s98
      %s113 = sphi 0, %s99
      %s117 = sphi 0, %s117
      %s119 = sphi 0, %s117
      %s120 = sphi 0, %s119
      %s134 = sphi 0, %s120
      %s138 = sphi 0, %s138
      %s140 = sphi 0, %s138
      %s141 = sphi 0, %s140
      %s155 = sphi 0, %s141
      %s159 = sphi 0, %s159
      %s161 = sphi 0, %s159
      %s162 = sphi 0, %s161
      %s176 = sphi 0, %s162
      %s180 = sphi 0, %s180
      %s182 = sphi 0, %s180
      %s183 = sphi 0, %s182
      %s197 = sphi 0, %s183
      %s203 = sphi 0, %s205
      %s206 = sphi 0, %s203
      %s207 = sphi 0, %s206
      %s223 = sphi 0, %s207
    $region4: #{tpu_custom_call.1} parent=1 // loop_header_branch
      %23 = sbr.rel (%p21) target = $region8
    $region5: #{tpu_custom_call.1} parent=1 // loop_body
      %s25 = ssub.s32 %s20, 1
      %s26 = ssub.s32 %s20, 2
      %s27 = sadd.s32 %s20, 1
      %s28 = ssub.s32 %s20, %s27
      %p29 = scmp.eq.s32.totalorder %s28, 0
      %s31 = sadd.s32 %s30, 1
      %s32 = scalar_select %p29, %s30, %s31
      %p35 = pneg %p29
      %p36 = scmp.eq.s32.totalorder %s20, 1
      %p37 = por %p35, %p36
      %p38 = scmp.ne.s32.totalorder %s30, %s33
      %p39 = scmp.eq.s32.totalorder %s20, 0
      %p40 = por %p38, %p39
      %p41 = scmp.ne.s32.totalorder %s30, %s33
      %p42 = scmp.eq.s32.totalorder %s25, 1
      %p43 = por %p41, %p42
      %p44 = scmp.ne.s32.totalorder %s33, %s34
      %p45 = scmp.eq.s32.totalorder %s25, 0
      %p46 = por %p44, %p45
      %p47 = scmp.ne.s32.totalorder %s33, %s34
      %p48 = scmp.eq.s32.totalorder %s26, 1
      %p49 = por %p47, %p48
      %p51 = scmp.ne.s32.totalorder %s34, %s50
      %p52 = scmp.eq.s32.totalorder %s26, 0
      %p53 = por %p51, %p52
      %s55 = sadd.s32 %s54, 1
      %p58 = scmp.eq.s32.totalorder %s20, 1
      %p59 = scmp.ne.s32.totalorder %s54, %s56
      %p60 = scmp.eq.s32.totalorder %s20, 0
      %p61 = por %p59, %p60
      %p62 = scmp.ne.s32.totalorder %s54, %s56
      %p63 = scmp.eq.s32.totalorder %s25, 1
      %p64 = por %p62, %p63
      %p65 = scmp.ne.s32.totalorder %s56, %s57
      %p66 = scmp.eq.s32.totalorder %s25, 0
      %p67 = por %p65, %p66
      %p68 = scmp.ne.s32.totalorder %s56, %s57
      %p69 = scmp.eq.s32.totalorder %s26, 1
      %p70 = por %p68, %p69
      %p72 = scmp.ne.s32.totalorder %s57, %s71
      %p73 = scmp.eq.s32.totalorder %s26, 0
      %p74 = por %p72, %p73
      %s76 = sadd.s32 %s75, 1
      %p79 = scmp.eq.s32.totalorder %s20, 1
      %p80 = scmp.ne.s32.totalorder %s75, %s77
      %p81 = scmp.eq.s32.totalorder %s20, 0
      %p82 = por %p80, %p81
      %p83 = scmp.ne.s32.totalorder %s75, %s77
      %p84 = scmp.eq.s32.totalorder %s25, 1
      %p85 = por %p83, %p84
      %p86 = scmp.ne.s32.totalorder %s77, %s78
      %p87 = scmp.eq.s32.totalorder %s25, 0
      %p88 = por %p86, %p87
      %p89 = scmp.ne.s32.totalorder %s77, %s78
      %p90 = scmp.eq.s32.totalorder %s26, 1
      %p91 = por %p89, %p90
      %p93 = scmp.ne.s32.totalorder %s78, %s92
      %p94 = scmp.eq.s32.totalorder %s26, 0
      %p95 = por %p93, %p94
      %s97 = sadd.s32 %s96, 1
      %p100 = scmp.eq.s32.totalorder %s20, 1
      %p101 = scmp.ne.s32.totalorder %s96, %s98
      %p102 = scmp.eq.s32.totalorder %s20, 0
      %p103 = por %p101, %p102
      %p104 = scmp.ne.s32.totalorder %s96, %s98
      %p105 = scmp.eq.s32.totalorder %s25, 1
      %p106 = por %p104, %p105
      %p107 = scmp.ne.s32.totalorder %s98, %s99
      %p108 = scmp.eq.s32.totalorder %s25, 0
      %p109 = por %p107, %p108
      %p110 = scmp.ne.s32.totalorder %s98, %s99
      %p111 = scmp.eq.s32.totalorder %s26, 1
      %p112 = por %p110, %p111
      %p114 = scmp.ne.s32.totalorder %s99, %s113
      %p115 = scmp.eq.s32.totalorder %s26, 0
      %p116 = por %p114, %p115
      %s118 = sadd.s32 %s117, 1
      %p121 = scmp.eq.s32.totalorder %s20, 1
      %p122 = scmp.ne.s32.totalorder %s117, %s119
      %p123 = scmp.eq.s32.totalorder %s20, 0
      %p124 = por %p122, %p123
      %p125 = scmp.ne.s32.totalorder %s117, %s119
      %p126 = scmp.eq.s32.totalorder %s25, 1
      %p127 = por %p125, %p126
      %p128 = scmp.ne.s32.totalorder %s119, %s120
      %p129 = scmp.eq.s32.totalorder %s25, 0
      %p130 = por %p128, %p129
      %p131 = scmp.ne.s32.totalorder %s119, %s120
      %p132 = scmp.eq.s32.totalorder %s26, 1
      %p133 = por %p131, %p132
      %p135 = scmp.ne.s32.totalorder %s120, %s134
      %p136 = scmp.eq.s32.totalorder %s26, 0
      %p137 = por %p135, %p136
      %s139 = sadd.s32 %s138, 1
      %p142 = scmp.eq.s32.totalorder %s20, 1
      %p143 = scmp.ne.s32.totalorder %s138, %s140
      %p144 = scmp.eq.s32.totalorder %s20, 0
      %p145 = por %p143, %p144
      %p146 = scmp.ne.s32.totalorder %s138, %s140
      %p147 = scmp.eq.s32.totalorder %s25, 1
      %p148 = por %p146, %p147
      %p149 = scmp.ne.s32.totalorder %s140, %s141
      %p150 = scmp.eq.s32.totalorder %s25, 0
      %p151 = por %p149, %p150
      %p152 = scmp.ne.s32.totalorder %s140, %s141
      %p153 = scmp.eq.s32.totalorder %s26, 1
      %p154 = por %p152, %p153
      %p156 = scmp.ne.s32.totalorder %s141, %s155
      %p157 = scmp.eq.s32.totalorder %s26, 0
      %p158 = por %p156, %p157
      %s160 = sadd.s32 %s159, 1
      %p163 = scmp.eq.s32.totalorder %s20, 1
      %p164 = scmp.ne.s32.totalorder %s159, %s161
      %p165 = scmp.eq.s32.totalorder %s20, 0
      %p166 = por %p164, %p165
      %p167 = scmp.ne.s32.totalorder %s159, %s161
      %p168 = scmp.eq.s32.totalorder %s25, 1
      %p169 = por %p167, %p168
      %p170 = scmp.ne.s32.totalorder %s161, %s162
      %p171 = scmp.eq.s32.totalorder %s25, 0
      %p172 = por %p170, %p171
      %p173 = scmp.ne.s32.totalorder %s161, %s162
      %p174 = scmp.eq.s32.totalorder %s26, 1
      %p175 = por %p173, %p174
      %p177 = scmp.ne.s32.totalorder %s162, %s176
      %p178 = scmp.eq.s32.totalorder %s26, 0
      %p179 = por %p177, %p178
      %s181 = sadd.s32 %s180, 1
      %p184 = scmp.eq.s32.totalorder %s20, 1
      %p185 = scmp.ne.s32.totalorder %s180, %s182
      %p186 = scmp.eq.s32.totalorder %s20, 0
      %p187 = por %p185, %p186
      %p188 = scmp.ne.s32.totalorder %s180, %s182
      %p189 = scmp.eq.s32.totalorder %s25, 1
      %p190 = por %p188, %p189
      %p191 = scmp.ne.s32.totalorder %s182, %s183
      %p192 = scmp.eq.s32.totalorder %s25, 0
      %p193 = por %p191, %p192
      %p194 = scmp.ne.s32.totalorder %s182, %s183
      %p195 = scmp.eq.s32.totalorder %s26, 1
      %p196 = por %p194, %p195
      %p198 = scmp.ne.s32.totalorder %s183, %s197
      %p199 = scmp.eq.s32.totalorder %s26, 0
      %p200 = por %p198, %p199
      %s201 = ssub.s32 %s20, %s27
      %p202 = scmp.eq.s32.totalorder %s201, 0
      %s204 = sadd.s32 %s203, 1
      %s205 = scalar_select %p202, %s203, %s204
      %p208 = pneg %p202
      %p209 = scmp.eq.s32.totalorder %s20, 1
      %p210 = por %p208, %p209
      %p211 = scmp.ne.s32.totalorder %s203, %s206
      %p212 = scmp.eq.s32.totalorder %s20, 0
      %p213 = por %p211, %p212
      %p214 = scmp.ne.s32.totalorder %s203, %s206
      %p215 = scmp.eq.s32.totalorder %s25, 1
      %p216 = por %p214, %p215
      %p217 = scmp.ne.s32.totalorder %s206, %s207
      %p218 = scmp.eq.s32.totalorder %s25, 0
      %p219 = por %p217, %p218
      %p220 = scmp.ne.s32.totalorder %s206, %s207
      %p221 = scmp.eq.s32.totalorder %s26, 1
      %p222 = por %p220, %p221
      %p224 = scmp.ne.s32.totalorder %s207, %s223
      %p225 = scmp.eq.s32.totalorder %s26, 0
      %p226 = por %p224, %p225
      %p227 = scmp.le.s32.totalorder 1, %s20
      %p228 = scmp.lt.s32.totalorder %s20, 3
      %p229 = pnand %p227, %p228
      %p230 = pneg %p229
      // Predicated region
      $region9: #{tpu_custom_call.1} parent=5 // pred_check
        _
      $region10: #{tpu_custom_call.1} parent=5 // pred_check_branch
        %232 = sbr.rel (%p229) target = $region12
      $region11: #{tpu_custom_call.1} parent=5 // pred_region
        %s233 = ssub.s32 %s20, 1
        // Predicated region
        $region13: #{tpu_custom_call.1} parent=11 // pred_check
          %p234 = pneg %p67
        $region14: #{tpu_custom_call.1} parent=11 // pred_check_branch
          %236 = sbr.rel (%p234) target = $region16
        $region15: #{tpu_custom_call.1} parent=11 // pred_region
          _
        $region16: #{tpu_custom_call.1} parent=11 // pred_fallthru
          _
        // Predicated region
        $region17: #{tpu_custom_call.1} parent=11 // pred_check
          %p237 = pneg %p88
        $region18: #{tpu_custom_call.1} parent=11 // pred_check_branch
          %239 = sbr.rel (%p237) target = $region20
        $region19: #{tpu_custom_call.1} parent=11 // pred_region
          _
        $region20: #{tpu_custom_call.1} parent=11 // pred_fallthru
          _
        // Predicated region
        $region21: #{tpu_custom_call.1} parent=11 // pred_check
          %p240 = pneg %p109
        $region22: #{tpu_custom_call.1} parent=11 // pred_check_branch
          %242 = sbr.rel (%p240) target = $region24
        $region23: #{tpu_custom_call.1} parent=11 // pred_region
          _
        $region24: #{tpu_custom_call.1} parent=11 // pred_fallthru
          _
        // Predicated region
        $region25: #{tpu_custom_call.1} parent=11 // pred_check
          %p243 = pneg %p130
        $region26: #{tpu_custom_call.1} parent=11 // pred_check_branch
          %245 = sbr.rel (%p243) target = $region28
        $region27: #{tpu_custom_call.1} parent=11 // pred_region
          _
        $region28: #{tpu_custom_call.1} parent=11 // pred_fallthru
          _
        // Predicated region
        $region29: #{tpu_custom_call.1} parent=11 // pred_check
          %p246 = pneg %p151
        $region30: #{tpu_custom_call.1} parent=11 // pred_check_branch
          %248 = sbr.rel (%p246) target = $region32
        $region31: #{tpu_custom_call.1} parent=11 // pred_region
          _
        $region32: #{tpu_custom_call.1} parent=11 // pred_fallthru
          _
        // Predicated region
        $region33: #{tpu_custom_call.1} parent=11 // pred_check
          %p249 = pneg %p172
        $region34: #{tpu_custom_call.1} parent=11 // pred_check_branch
          %251 = sbr.rel (%p249) target = $region36
        $region35: #{tpu_custom_call.1} parent=11 // pred_region
          _
        $region36: #{tpu_custom_call.1} parent=11 // pred_fallthru
          _
        // Predicated region
        $region37: #{tpu_custom_call.1} parent=11 // pred_check
          %p252 = pneg %p193
        $region38: #{tpu_custom_call.1} parent=11 // pred_check_branch
          %254 = sbr.rel (%p252) target = $region40
        $region39: #{tpu_custom_call.1} parent=11 // pred_region
          _
        $region40: #{tpu_custom_call.1} parent=11 // pred_fallthru
          _
      $region12: #{tpu_custom_call.1} parent=5 // pred_fallthru
        _
      %p255 = scmp.lt.s32.totalorder %s20, 2
      // Predicated region
      $region41: #{tpu_custom_call.1} parent=5 // pred_check
        %p256 = pneg %p255
      $region42: #{tpu_custom_call.1} parent=5 // pred_check_branch
        %258 = sbr.rel (%p256) target = $region44
      $region43: #{tpu_custom_call.1} parent=5 // pred_region
        // Predicated region
        $region45: #{tpu_custom_call.1} parent=43 // pred_check
          %p259 = pneg %p40
        $region46: #{tpu_custom_call.1} parent=43 // pred_check_branch
          %261 = sbr.rel (%p259) target = $region48
        $region47: #{tpu_custom_call.1} parent=43 // pred_region
          %s262 = sand.u32 %s30, 1
          %s263 = scalar_lea.sflag [#allocation3], %s262
          %s264 = sand.u32 %s30, 1
          %s265 = smul.addr %s264, 8
          %s266 = scalar_lea.vmem [#allocation2], %s265
          %s268 = ssub.s32 128, 128
          %269 = vsyncadd %s263, %s268
          %s270 = smul.addr %s20, 2
          %s271 = smul.addr %s270, 64
          %s272 = scalar_lea.hbm %s0, %s271
          %s274 = sshll.u32 %s266, 4
          %s275 = int_to_ptr.vmem [resolvable:$true] %s274
          %277 = dma.hbm_to_vmem [thread:$0]  %s272, 128, %s275, %s263
        $region48: #{tpu_custom_call.1} parent=43 // pred_fallthru
          _
      $region44: #{tpu_custom_call.1} parent=5 // pred_fallthru
        _
      %p278 = scmp.le.s32.totalorder 1, %s20
      %p279 = scmp.lt.s32.totalorder %s20, 3
      %p280 = pnand %p278, %p279
      %p281 = pneg %p280
      // Predicated region
      $region49: #{tpu_custom_call.1} parent=5 // pred_check
        _
      $region50: #{tpu_custom_call.1} parent=5 // pred_check_branch
        %283 = sbr.rel (%p280) target = $region52
      $region51: #{tpu_custom_call.1} parent=5 // pred_region
        %s284 = ssub.s32 %s20, 1
        %s285 = sand.u32 %s33, 1
        %s286 = scalar_lea.sflag [#allocation3], %s285
        %s287 = sand.u32 %s33, 1
        %s288 = smul.addr %s287, 8
        %s289 = scalar_lea.vmem [#allocation2], %s288
        // Predicated region
        $region53: #{tpu_custom_call.1} parent=51 // pred_check
          %p290 = pneg %p46
        $region54: #{tpu_custom_call.1} parent=51 // pred_check_branch
          %292 = sbr.rel (%p290) target = $region56
        $region55: #{tpu_custom_call.1} parent=51 // pred_region
          %293 = dma.done %s286, 128
        $region56: #{tpu_custom_call.1} parent=51 // pred_fallthru
          _
        %s294 = sand.u32 %s33, 1
        %s295 = scalar_lea.sflag [#allocation3], %s294
        %s296 = sand.u32 %s33, 1
        %s297 = smul.addr %s296, 8
        %s298 = scalar_lea.vmem [#allocation2], %s297
        %p299 = pneg %p46
        %p300 = pneg %p43
        %p301 = pneg %p67
        %p302 = pneg %p64
        %p303 = pneg %p88
        %p304 = pneg %p85
        %p305 = pneg %p109
        %p306 = pneg %p106
        %p307 = pneg %p130
        %p308 = pneg %p127
        %p309 = pneg %p151
        %p310 = pneg %p148
        %p311 = pneg %p172
        %p312 = pneg %p169
        %p313 = pneg %p193
        %p314 = pneg %p190
        %p315 = pneg %p219
        %p316 = pneg %p216
        %s317 = sand.u32 %s206, 1
        %s318 = scalar_lea.sflag [#allocation4], %s317
        %s319 = sand.u32 %s206, 1
        %s320 = smul.addr %s319, 8
        %s321 = scalar_lea.vmem [#allocation5], %s320
        %v322 = vld [vmem:[%s289] sm:$0xff]
        %v323 = vld [vmem:[%s1] sm:$0xff]
        %325 = vset.pattern.permute.xlu0 0
        %326 = vperm.xlu0 %325, %v323
        %v327 = vpop.permute.xlu0 %326
        %v330 = vlaneseq
        %v331 = vshrl.u32 %v330, 7
        %v332 = vsub.s32 0, %v331
        %v333 = vrot.slane %v322, %v332
        %v334 = vlaneseq
        %v335 = vshrl.u32 %v334, 7
        %v336 = vsub.s32 4, %v335
        %v337 = vrot.slane %v322, %v336
        %v340 = vlaneseq
        %v341 = vshrl.u32 %v340, 7
        %v342 = vsub.s32 0, %v341
        %v343 = vrot.slane %v333, %v342
        %v344 = vlaneseq
        %v345 = vshrl.u32 %v344, 7
        %v346 = vsub.s32 0, %v345
        %v347 = vrot.slane %v337, %v346
        %v348 = vmul.f32 %v327, %v343
        %v349 = vmul.f32 %v327, %v347
        %350 = vset.pattern.permute.xlu0 1
        %351 = vperm.xlu0 %350, %v323
        %v352 = vpop.permute.xlu0 %351
        %v354 = vlaneseq
        %v355 = vshrl.u32 %v354, 7
        %v356 = vsub.s32 1, %v355
        %v357 = vrot.slane %v322, %v356
        %v358 = vlaneseq
        %v359 = vshrl.u32 %v358, 7
        %v360 = vsub.s32 5, %v359
        %v361 = vrot.slane %v322, %v360
        %v364 = vlaneseq
        %v365 = vshrl.u32 %v364, 7
        %v366 = vsub.s32 1, %v365
        %v367 = vrot.slane %v357, %v366
        %v368 = vlaneseq
        %v369 = vshrl.u32 %v368, 7
        %v370 = vsub.s32 1, %v369
        %v371 = vrot.slane %v361, %v370
        %v372 = vmul.f32 %v352, %v367
        %v373 = vmul.f32 %v352, %v371
        %374 = vset.pattern.permute.xlu0 2
        %375 = vperm.xlu0 %374, %v323
        %v376 = vpop.permute.xlu0 %375
        %v378 = vlaneseq
        %v379 = vshrl.u32 %v378, 7
        %v380 = vsub.s32 2, %v379
        %v381 = vrot.slane %v322, %v380
        %v382 = vlaneseq
        %v383 = vshrl.u32 %v382, 7
        %v384 = vsub.s32 6, %v383
        %v385 = vrot.slane %v322, %v384
        %v388 = vlaneseq
        %v389 = vshrl.u32 %v388, 7
        %v390 = vsub.s32 2, %v389
        %v391 = vrot.slane %v381, %v390
        %v392 = vlaneseq
        %v393 = vshrl.u32 %v392, 7
        %v394 = vsub.s32 2, %v393
        %v395 = vrot.slane %v385, %v394
        %v396 = vmul.f32 %v376, %v391
        %v397 = vmul.f32 %v376, %v395
        %v398 = vadd.f32 %v348, %v396
        %v399 = vadd.f32 %v349, %v397
        %400 = vset.pattern.permute.xlu0 3
        %401 = vperm.xlu0 %400, %v323
        %v402 = vpop.permute.xlu0 %401
        %v404 = vlaneseq
        %v405 = vshrl.u32 %v404, 7
        %v406 = vsub.s32 3, %v405
        %v407 = vrot.slane %v322, %v406
        %v408 = vlaneseq
        %v409 = vshrl.u32 %v408, 7
        %v410 = vsub.s32 7, %v409
        %v411 = vrot.slane %v322, %v410
        %v414 = vlaneseq
        %v415 = vshrl.u32 %v414, 7
        %v416 = vsub.s32 3, %v415
        %v417 = vrot.slane %v407, %v416
        %v418 = vlaneseq
        %v419 = vshrl.u32 %v418, 7
        %v420 = vsub.s32 3, %v419
        %v421 = vrot.slane %v411, %v420
        %v422 = vmul.f32 %v402, %v417
        %v423 = vmul.f32 %v402, %v421
        %v424 = vadd.f32 %v372, %v422
        %v425 = vadd.f32 %v373, %v423
        %v426 = vadd.f32 %v398, %v424
        %v427 = vadd.f32 %v399, %v425
        %v428 = vld [vmem:[%s2] sm:$0xff]
        %430 = vset.pattern.permute.xlu0 0
        %431 = vperm.xlu0 %430, %v428
        %v432 = vpop.permute.xlu0 %431
        %v434 = vadd.f32 %v426, %v432
        %v435 = vadd.f32 %v427, %v432
        %v436 = vmax.f32 %v434, 0.0
        %v437 = vmax.f32 %v435, 0.0
        %v438 = vld [vmem:[%s3] sm:$0xff]
        %v439 = vld [vmem:[%s5] sm:$0xff]
        %v440 = vld [vmem:[%s5 + $0x8] sm:$0xff]
        %v441 = vld [vmem:[%s5 + $0x10] sm:$0x1]
        %v442 = vld [vmem:[%s5 + $0x18] sm:$0x1]
        %443 = vrot.lane.b32.xlu0 %v436, 17
        %v444 = vpop.permute.xlu0 %443
        %445 = vrot.lane.b32.xlu0 %v437, 17
        %v446 = vpop.permute.xlu0 %445
        %v447 = vlaneseq
        %v448 = vand.u32 %v447, 127
        %vm449 = vcmp.lt.s32.totalorder %v448, 17
        %v450 = vsel %vm449, %v444, %v446
        %v451 = vsel %vm449, %v446, %v444
        %453 = vset.pattern.permute.xlu0 0
        %454 = vperm.xlu0 %453, %v438
        %v455 = vpop.permute.xlu0 %454
        %v457 = vlaneseq
        %v458 = vshrl.u32 %v457, 7
        %v459 = vsub.s32 0, %v458
        %v460 = vrot.slane %v439, %v459
        %v461 = vlaneseq
        %v462 = vshrl.u32 %v461, 7
        %v463 = vsub.s32 0, %v462
        %v464 = vrot.slane %v440, %v463
        %v465 = vmul.f32 %v455, %v460
        %v466 = vmul.f32 %v455, %v464
        %v467 = vmul.f32 %v451, %v465
        %v468 = vmul.f32 %v450, %v466
        %v469 = vadd.f32 %v467, 0.0
        %v470 = vadd.f32 %v468, 0.0
        %471 = vrot.lane.b32.xlu0 %v436, 16
        %v472 = vpop.permute.xlu0 %471
        %473 = vrot.lane.b32.xlu0 %v437, 16
        %v474 = vpop.permute.xlu0 %473
        %vm475 = vcmp.lt.s32.totalorder %v448, 16
        %v476 = vsel %vm475, %v472, %v474
        %v477 = vsel %vm475, %v474, %v472
        %478 = vset.pattern.permute.xlu0 1
        %479 = vperm.xlu0 %478, %v438
        %v480 = vpop.permute.xlu0 %479
        %v482 = vlaneseq
        %v483 = vshrl.u32 %v482, 7
        %v484 = vsub.s32 1, %v483
        %v485 = vrot.slane %v439, %v484
        %v486 = vlaneseq
        %v487 = vshrl.u32 %v486, 7
        %v488 = vsub.s32 1, %v487
        %v489 = vrot.slane %v440, %v488
        %v490 = vmul.f32 %v480, %v485
        %v491 = vmul.f32 %v480, %v489
        %v492 = vmul.f32 %v477, %v490
        %v493 = vmul.f32 %v476, %v491
        %v494 = vadd.f32 %v492, 0.0
        %v495 = vadd.f32 %v493, 0.0
        %496 = vrot.lane.b32.xlu0 %v436, 15
        %v497 = vpop.permute.xlu0 %496
        %498 = vrot.lane.b32.xlu0 %v437, 15
        %v499 = vpop.permute.xlu0 %498
        %vm500 = vcmp.lt.s32.totalorder %v448, 15
        %v501 = vsel %vm500, %v497, %v499
        %v502 = vsel %vm500, %v499, %v497
        %503 = vset.pattern.permute.xlu0 2
        %504 = vperm.xlu0 %503, %v438
        %v505 = vpop.permute.xlu0 %504
        %v507 = vlaneseq
        %v508 = vshrl.u32 %v507, 7
        %v509 = vsub.s32 2, %v508
        %v510 = vrot.slane %v439, %v509
        %v511 = vlaneseq
        %v512 = vshrl.u32 %v511, 7
        %v513 = vsub.s32 2, %v512
        %v514 = vrot.slane %v440, %v513
        %v515 = vmul.f32 %v505, %v510
        %v516 = vmul.f32 %v505, %v514
        %v517 = vmul.f32 %v502, %v515
        %v518 = vmul.f32 %v501, %v516
        %v519 = vadd.f32 %v469, %v517
        %v520 = vadd.f32 %v470, %v518
        %521 = vrot.lane.b32.xlu0 %v436, 1
        %v522 = vpop.permute.xlu0 %521
        %523 = vrot.lane.b32.xlu0 %v437, 1
        %v524 = vpop.permute.xlu0 %523
        %vm525 = vcmp.lt.s32.totalorder %v448, 1
        %v526 = vsel %vm525, %v522, %v524
        %v527 = vsel %vm525, %v524, %v522
        %528 = vset.pattern.permute.xlu0 3
        %529 = vperm.xlu0 %528, %v438
        %v530 = vpop.permute.xlu0 %529
        %v532 = vlaneseq
        %v533 = vshrl.u32 %v532, 7
        %v534 = vsub.s32 3, %v533
        %v535 = vrot.slane %v439, %v534
        %v536 = vlaneseq
        %v537 = vshrl.u32 %v536, 7
        %v538 = vsub.s32 3, %v537
        %v539 = vrot.slane %v440, %v538
        %v540 = vmul.f32 %v530, %v535
        %v541 = vmul.f32 %v530, %v539
        %v542 = vmul.f32 %v527, %v540
        %v543 = vmul.f32 %v526, %v541
        %v544 = vadd.f32 %v494, %v542
        %v545 = vadd.f32 %v495, %v543
        %546 = vset.pattern.permute.xlu0 4
        %547 = vperm.xlu0 %546, %v438
        %v548 = vpop.permute.xlu0 %547
        %v550 = vmul.f32 %v436, %v548
        %v551 = vmul.f32 %v437, %v548
        %v552 = vadd.f32 %v519, %v550
        %v553 = vadd.f32 %v520, %v551
        %554 = vrot.lane.b32.xlu0 %v436, 127
        %v555 = vpop.permute.xlu0 %554
        %556 = vrot.lane.b32.xlu0 %v437, 127
        %v557 = vpop.permute.xlu0 %556
        %vm558 = vcmp.lt.s32.totalorder %v448, 127
        %v559 = vsel %vm558, %v555, %v557
        %v560 = vsel %vm558, %v557, %v555
        %561 = vset.pattern.permute.xlu0 5
        %562 = vperm.xlu0 %561, %v438
        %v563 = vpop.permute.xlu0 %562
        %v565 = vlaneseq
        %v566 = vshrl.u32 %v565, 7
        %v567 = vsub.s32 5, %v566
        %v568 = vrot.slane %v439, %v567
        %v569 = vlaneseq
        %v570 = vshrl.u32 %v569, 7
        %v571 = vsub.s32 5, %v570
        %v572 = vrot.slane %v440, %v571
        %v573 = vmul.f32 %v563, %v568
        %v574 = vmul.f32 %v563, %v572
        %v575 = vmul.f32 %v559, %v573
        %v576 = vmul.f32 %v560, %v574
        %v577 = vadd.f32 %v544, %v575
        %v578 = vadd.f32 %v545, %v576
        %579 = vrot.lane.b32.xlu0 %v436, 113
        %v580 = vpop.permute.xlu0 %579
        %581 = vrot.lane.b32.xlu0 %v437, 113
        %v582 = vpop.permute.xlu0 %581
        %vm583 = vcmp.lt.s32.totalorder %v448, 113
        %v584 = vsel %vm583, %v580, %v582
        %v585 = vsel %vm583, %v582, %v580
        %586 = vset.pattern.permute.xlu0 6
        %587 = vperm.xlu0 %586, %v438
        %v588 = vpop.permute.xlu0 %587
        %v590 = vlaneseq
        %v591 = vshrl.u32 %v590, 7
        %v592 = vsub.s32 6, %v591
        %v593 = vrot.slane %v439, %v592
        %v594 = vlaneseq
        %v595 = vshrl.u32 %v594, 7
        %v596 = vsub.s32 6, %v595
        %v597 = vrot.slane %v440, %v596
        %v598 = vmul.f32 %v588, %v593
        %v599 = vmul.f32 %v588, %v597
        %v600 = vmul.f32 %v584, %v598
        %v601 = vmul.f32 %v585, %v599
        %v602 = vadd.f32 %v552, %v600
        %v603 = vadd.f32 %v553, %v601
        %604 = vrot.lane.b32.xlu0 %v436, 112
        %v605 = vpop.permute.xlu0 %604
        %606 = vrot.lane.b32.xlu0 %v437, 112
        %v607 = vpop.permute.xlu0 %606
        %vm608 = vcmp.lt.s32.totalorder %v448, 112
        %v609 = vsel %vm608, %v605, %v607
        %v610 = vsel %vm608, %v607, %v605
        %611 = vset.pattern.permute.xlu0 7
        %612 = vperm.xlu0 %611, %v438
        %v613 = vpop.permute.xlu0 %612
        %v615 = vlaneseq
        %v616 = vshrl.u32 %v615, 7
        %v617 = vsub.s32 7, %v616
        %v618 = vrot.slane %v439, %v617
        %v619 = vlaneseq
        %v620 = vshrl.u32 %v619, 7
        %v621 = vsub.s32 7, %v620
        %v622 = vrot.slane %v440, %v621
        %v623 = vmul.f32 %v613, %v618
        %v624 = vmul.f32 %v613, %v622
        %v625 = vmul.f32 %v609, %v623
        %v626 = vmul.f32 %v610, %v624
        %v627 = vadd.f32 %v577, %v625
        %v628 = vadd.f32 %v578, %v626
        %629 = vrot.lane.b32.xlu0 %v436, 111
        %v630 = vpop.permute.xlu0 %629
        %631 = vrot.lane.b32.xlu0 %v437, 111
        %v632 = vpop.permute.xlu0 %631
        %vm633 = vcmp.lt.s32.totalorder %v448, 111
        %v634 = vsel %vm633, %v630, %v632
        %v635 = vsel %vm633, %v632, %v630
        %636 = vset.pattern.permute.xlu0 8
        %637 = vperm.xlu0 %636, %v438
        %v638 = vpop.permute.xlu0 %637
        %v640 = vlaneseq
        %v641 = vshrl.u32 %v640, 7
        %v642 = vsub.s32 0, %v641
        %v643 = vrot.slane %v441, %v642
        %v644 = vlaneseq
        %v645 = vshrl.u32 %v644, 7
        %v646 = vsub.s32 0, %v645
        %v647 = vrot.slane %v442, %v646
        %v648 = vmul.f32 %v638, %v643
        %v649 = vmul.f32 %v638, %v647
        %v650 = vmul.f32 %v634, %v648
        %v651 = vmul.f32 %v635, %v649
        %v652 = vadd.f32 %v602, %v650
        %v653 = vadd.f32 %v603, %v651
        %v654 = vadd.f32 %v652, %v627
        %v655 = vadd.f32 %v653, %v628
        %v656 = vld [vmem:[%s4] sm:$0xff]
        %658 = vset.pattern.permute.xlu0 0
        %659 = vperm.xlu0 %658, %v656
        %v660 = vpop.permute.xlu0 %659
        %v662 = vadd.f32 %v654, %v660
        %v663 = vadd.f32 %v655, %v660
        %v664 = vmax.f32 %v662, 0.0
        %v665 = vmax.f32 %v663, 0.0
        %v666 = vld [vmem:[%s6] sm:$0xf]
        %668 = vset.pattern.permute.xlu0 0
        %669 = vperm.xlu0 %668, %v666
        %v670 = vpop.permute.xlu0 %669
        %v672 = vlaneseq
        %v673 = vshrl.u32 %v672, 7
        %v674 = vsub.s32 0, %v673
        %v675 = vrot.slane %v664, %v674
        %v676 = vlaneseq
        %v677 = vshrl.u32 %v676, 7
        %v678 = vsub.s32 0, %v677
        %v679 = vrot.slane %v665, %v678
        %v680 = vmul.f32 %v670, %v675
        %v681 = vmul.f32 %v670, %v679
        %682 = vset.pattern.permute.xlu0 1
        %683 = vperm.xlu0 %682, %v666
        %v684 = vpop.permute.xlu0 %683
        %v686 = vlaneseq
        %v687 = vshrl.u32 %v686, 7
        %v688 = vsub.s32 1, %v687
        %v689 = vrot.slane %v664, %v688
        %v690 = vlaneseq
        %v691 = vshrl.u32 %v690, 7
        %v692 = vsub.s32 1, %v691
        %v693 = vrot.slane %v665, %v692
        %v694 = vmul.f32 %v684, %v689
        %v695 = vmul.f32 %v684, %v693
        %696 = vset.pattern.permute.xlu0 2
        %697 = vperm.xlu0 %696, %v666
        %v698 = vpop.permute.xlu0 %697
        %v700 = vlaneseq
        %v701 = vshrl.u32 %v700, 7
        %v702 = vsub.s32 2, %v701
        %v703 = vrot.slane %v664, %v702
        %v704 = vlaneseq
        %v705 = vshrl.u32 %v704, 7
        %v706 = vsub.s32 2, %v705
        %v707 = vrot.slane %v665, %v706
        %v708 = vmul.f32 %v698, %v703
        %v709 = vmul.f32 %v698, %v707
        %v710 = vadd.f32 %v680, %v708
        %v711 = vadd.f32 %v681, %v709
        %712 = vset.pattern.permute.xlu0 3
        %713 = vperm.xlu0 %712, %v666
        %v714 = vpop.permute.xlu0 %713
        %v716 = vlaneseq
        %v717 = vshrl.u32 %v716, 7
        %v718 = vsub.s32 3, %v717
        %v719 = vrot.slane %v664, %v718
        %v720 = vlaneseq
        %v721 = vshrl.u32 %v720, 7
        %v722 = vsub.s32 3, %v721
        %v723 = vrot.slane %v665, %v722
        %v724 = vmul.f32 %v714, %v719
        %v725 = vmul.f32 %v714, %v723
        %v726 = vadd.f32 %v694, %v724
        %v727 = vadd.f32 %v695, %v725
        %728 = vset.pattern.permute.xlu0 4
        %729 = vperm.xlu0 %728, %v666
        %v730 = vpop.permute.xlu0 %729
        %v732 = vlaneseq
        %v733 = vshrl.u32 %v732, 7
        %v734 = vsub.s32 4, %v733
        %v735 = vrot.slane %v664, %v734
        %v736 = vlaneseq
        %v737 = vshrl.u32 %v736, 7
        %v738 = vsub.s32 4, %v737
        %v739 = vrot.slane %v665, %v738
        %v740 = vmul.f32 %v730, %v735
        %v741 = vmul.f32 %v730, %v739
        %v742 = vadd.f32 %v710, %v740
        %v743 = vadd.f32 %v711, %v741
        %744 = vset.pattern.permute.xlu0 5
        %745 = vperm.xlu0 %744, %v666
        %v746 = vpop.permute.xlu0 %745
        %v748 = vlaneseq
        %v749 = vshrl.u32 %v748, 7
        %v750 = vsub.s32 5, %v749
        %v751 = vrot.slane %v664, %v750
        %v752 = vlaneseq
        %v753 = vshrl.u32 %v752, 7
        %v754 = vsub.s32 5, %v753
        %v755 = vrot.slane %v665, %v754
        %v756 = vmul.f32 %v746, %v751
        %v757 = vmul.f32 %v746, %v755
        %v758 = vadd.f32 %v726, %v756
        %v759 = vadd.f32 %v727, %v757
        %760 = vset.pattern.permute.xlu0 6
        %761 = vperm.xlu0 %760, %v666
        %v762 = vpop.permute.xlu0 %761
        %v764 = vlaneseq
        %v765 = vshrl.u32 %v764, 7
        %v766 = vsub.s32 6, %v765
        %v767 = vrot.slane %v664, %v766
        %v768 = vlaneseq
        %v769 = vshrl.u32 %v768, 7
        %v770 = vsub.s32 6, %v769
        %v771 = vrot.slane %v665, %v770
        %v772 = vmul.f32 %v762, %v767
        %v773 = vmul.f32 %v762, %v771
        %v774 = vadd.f32 %v742, %v772
        %v775 = vadd.f32 %v743, %v773
        %776 = vset.pattern.permute.xlu0 7
        %777 = vperm.xlu0 %776, %v666
        %v778 = vpop.permute.xlu0 %777
        %v780 = vlaneseq
        %v781 = vshrl.u32 %v780, 7
        %v782 = vsub.s32 7, %v781
        %v783 = vrot.slane %v664, %v782
        %v784 = vlaneseq
        %v785 = vshrl.u32 %v784, 7
        %v786 = vsub.s32 7, %v785
        %v787 = vrot.slane %v665, %v786
        %v788 = vmul.f32 %v778, %v783
        %v789 = vmul.f32 %v778, %v787
        %v790 = vadd.f32 %v758, %v788
        %v791 = vadd.f32 %v759, %v789
        %v792 = vadd.f32 %v774, %v790
        %v793 = vadd.f32 %v775, %v791
        %v794 = vld [vmem:[%s7] sm:$0xf]
        %796 = vset.pattern.permute.xlu0 0
        %797 = vperm.xlu0 %796, %v794
        %v798 = vpop.permute.xlu0 %797
        %v800 = vadd.f32 %v792, %v798
        %v801 = vadd.f32 %v793, %v798
        %v802 = vcombine.high %v322, %v322
        %v804 = vadd.f32 %v800, %v322
        %v805 = vadd.f32 %v801, %v802
        %v808 = vcombine.low %v804, %v805
        %810 = vst [vmem:[%s321] sm:$0xff] %v808
        %s811 = sand.u32 %s206, 1
        %s812 = scalar_lea.sflag [#allocation4], %s811
        %s813 = sand.u32 %s206, 1
        %s814 = smul.addr %s813, 8
        %s815 = scalar_lea.vmem [#allocation5], %s814
        // Predicated region
        $region57: #{tpu_custom_call.1} parent=51 // pred_check
          %p816 = pneg %p216
        $region58: #{tpu_custom_call.1} parent=51 // pred_check_branch
          %818 = sbr.rel (%p816) target = $region60
        $region59: #{tpu_custom_call.1} parent=51 // pred_region
          %s820 = ssub.s32 128, 128
          %821 = vsyncadd %s812, %s820
          %s822 = smul.addr %s25, 2
          %s823 = smul.addr %s822, 64
          %s824 = scalar_lea.hbm %s8, %s823
          %s826 = sshll.u32 %s815, 4
          %s827 = int_to_ptr.vmem [resolvable:$true] %s826
          %829 = dma.vmem_to_hbm [thread:$0]  %s827, 128, %s824, %s812
        $region60: #{tpu_custom_call.1} parent=51 // pred_fallthru
          _
      $region52: #{tpu_custom_call.1} parent=5 // pred_fallthru
        _
      %p830 = scmp.le.s32.totalorder 2, %s20
      // Predicated region
      $region61: #{tpu_custom_call.1} parent=5 // pred_check
        %p831 = pneg %p830
      $region62: #{tpu_custom_call.1} parent=5 // pred_check_branch
        %833 = sbr.rel (%p831) target = $region64
      $region63: #{tpu_custom_call.1} parent=5 // pred_region
        %s834 = ssub.s32 %s20, 2
        // Predicated region
        $region65: #{tpu_custom_call.1} parent=63 // pred_check
          %p835 = pneg %p222
        $region66: #{tpu_custom_call.1} parent=63 // pred_check_branch
          %837 = sbr.rel (%p835) target = $region68
        $region67: #{tpu_custom_call.1} parent=63 // pred_region
          %s838 = sand.u32 %s207, 1
          %s839 = scalar_lea.sflag [#allocation4], %s838
          %s840 = sand.u32 %s207, 1
          %s841 = smul.addr %s840, 8
          %s842 = scalar_lea.vmem [#allocation5], %s841
          %843 = dma.done %s839, 128
        $region68: #{tpu_custom_call.1} parent=63 // pred_fallthru
          _
      $region64: #{tpu_custom_call.1} parent=5 // pred_fallthru
        _
    $region6: #{tpu_custom_call.1} parent=1 // loop_footer
      %s24 = sadd.s32 1, %s20
    $region7: #{tpu_custom_call.1} parent=1 // loop_footer_branch
      %19 = sbr.rel target = $region3
    $region8: #{tpu_custom_call.1} parent=1 // loop_exit
      _
    %844 = vsyncpa [#allocation3], 1
    %s845 = scalar_lea.sflag [#allocation3], 1
    %846 = vsyncpa %s845, 1
    %847 = vsyncpa [#allocation4], 1
    %s848 = scalar_lea.sflag [#allocation4], 1
    %849 = vsyncpa %s848, 1

</llo_original>
